<compile_context>
chip_gen: v5e
topology: v5e:2x2
jax: 0.10.0
libtpu: 0.0.40
codegen_flags: <defaults>
</compile_context>

<pallas_src>
import jax
import jax.numpy as jnp
from jax import lax
from jax.experimental import pallas as pl
from jax.experimental.pallas import tpu as pltpu

HIDDEN = 32
INPUT_SIZE = 1


def rnn_kernel(x_ref, h0_ref, wih_ref, whh_ref, b_ref, wout_ref, bout_ref,
               y_ref, hN_ref, buf_ref):
    T = x_ref.shape[0]

    # ---- Pre-pass (hoisted off the serial dependency chain) ------------------
    # x_proj[t] = x_t * W_ih^T + (b_ih + b_hh): bulk VPU broadcast-multiply over
    # the whole sequence, written once into the reusable (T, B, H) VMEM slab.
    buf_ref[...] = x_ref[...] * wih_ref[...] + b_ref[...]          # (T, B, H)

    # ---- Serial recurrence: h carried in vregs through fori_loop -------------
    # Per step only: h @ W_hh^T (MXU) + add (VPU) + tanh (EUP).
    def step(t, h):
        pre = buf_ref[t] + jnp.dot(h, whh_ref[...],
                                   preferred_element_type=jnp.float32)
        h_new = jnp.tanh(pre)
        buf_ref[t] = h_new        # overwrite x_proj[t] with h_t (slab reuse)
        return h_new

    h_final = lax.fori_loop(0, T, step, h0_ref[...], unroll=(T <= 32))
    hN_ref[...] = h_final.astype(hN_ref.dtype)

    # ---- Hoisted output Linear(32 -> 1): one bulk mul + lane reduce ----------
    # y[t, b] = sum_h h_hist[t, b, h] * w_out[h] + b_out  — written as one slab.
    y = jnp.sum(buf_ref[...] * wout_ref[...], axis=-1) + bout_ref[...]   # (T, B)
    y_ref[...] = y.astype(y_ref.dtype)


def rnn_forward(x, h_state, params):
    """x: (B, T, 1) batch-first; h_state: (1, B, H) or None.
    Returns (outs (B, T, 1), h_state (1, B, H)) — matching the PyTorch module."""
    B, T, _ = x.shape
    H = HIDDEN
    if h_state is None:
        h0 = jnp.zeros((B, H), jnp.float32)
    else:
        h0 = jnp.asarray(h_state).reshape(B, H).astype(jnp.float32)

    x_tm = jnp.transpose(x, (1, 0, 2)).astype(jnp.float32)         # (T, B, 1)

    wih = params["w_ih"].reshape(1, 1, H).astype(jnp.float32)      # W_ih (H,1) -> row
    whh = params["w_hh"].T.astype(jnp.float32)                     # (H, H) = W_hh^T
    b = (params["b_ih"] + params["b_hh"]).reshape(1, 1, H).astype(jnp.float32)
    wout = params["w_out"].reshape(1, 1, H).astype(jnp.float32)    # Linear weight row
    bout = params["b_out"].reshape(1, 1).astype(jnp.float32)       # (1, 1)

    # NOTE: whole sequence is resident in VMEM ((T, B, H) f32 slab + inputs).
    # For very long T, chunk the time axis with an outer "arbitrary" grid axis
    # while carrying h in scratch across chunks (keeps within v7x's 64 MiB VMEM).
    y_tb, h_final = pl.pallas_call(
        rnn_kernel,
        out_shape=(
            jax.ShapeDtypeStruct((T, B), jnp.float32),             # y, time-major
            jax.ShapeDtypeStruct((B, H), jnp.float32),             # final hidden
        ),
        grid=(1,),
        in_specs=[
            pl.BlockSpec((T, B, 1), lambda i: (0, 0, 0)),          # x_tm
            pl.BlockSpec((B, H), lambda i: (0, 0)),                # h0
            pl.BlockSpec((1, 1, H), lambda i: (0, 0, 0)),          # W_ih row
            pl.BlockSpec((H, H), lambda i: (0, 0)),                # W_hh^T
            pl.BlockSpec((1, 1, H), lambda i: (0, 0, 0)),          # combined bias
            pl.BlockSpec((1, 1, H), lambda i: (0, 0, 0)),          # W_out row
            pl.BlockSpec((1, 1), lambda i: (0, 0)),                # b_out
        ],
        out_specs=[
            pl.BlockSpec((T, B), lambda i: (0, 0)),
            pl.BlockSpec((B, H), lambda i: (0, 0)),
        ],
        scratch_shapes=[pltpu.VMEM((T, B, H), jnp.float32)],       # x_proj / h history
        compiler_params=pltpu.CompilerParams(
            dimension_semantics=("arbitrary",)),
    )(x_tm, h0, wih, whh, b, wout, bout)

    outs = jnp.transpose(y_tb)[:, :, None]                         # (B, T, 1)
    h_state_out = h_final[None]                                    # (1, B, H)
    return outs, h_state_out


def init_params(key):
    """Deterministic init mimicking PyTorch's uniform(-1/sqrt(H), 1/sqrt(H))."""
    H = HIDDEN
    k1, k2, k3, k4, k5, k6 = jax.random.split(key, 6)
    bound = 1.0 / jnp.sqrt(jnp.array(H, jnp.float32))
    u = lambda k, shape: jax.random.uniform(k, shape, jnp.float32, -bound, bound)
    return {
        "w_ih": u(k1, (H, INPUT_SIZE)),   # PyTorch weight_ih_l0
        "w_hh": u(k2, (H, H)),            # PyTorch weight_hh_l0
        "b_ih": u(k3, (H,)),
        "b_hh": u(k4, (H,)),
        "w_out": u(k5, (1, H)),           # Linear(32, 1).weight
        "b_out": u(k6, (1,)),
    }


if __name__ == "__main__":
    key = jax.random.PRNGKey(0)
    pkey, xkey, hkey, x2key = jax.random.split(key, 4)
    params = init_params(pkey)

    # Pure-JAX reference of the PyTorch forward.
    def ref(x, h0, params):
        B, T, _ = x.shape
        h = h0
        ys = []
        for t in range(T):
            h = jnp.tanh(x[:, t, :] @ params["w_ih"].T + params["b_ih"]
                         + h @ params["w_hh"].T + params["b_hh"])
            ys.append(h @ params["w_out"].T + params["b_out"])
        return jnp.stack(ys, axis=1), h[None]

    # Case 1: module defaults (h_state = None), small shapes.
    B, T = 2, 8
    x = jax.random.normal(xkey, (B, T, INPUT_SIZE), jnp.float32)
    outs, h_out = rnn_forward(x, None, params)
    jax.block_until_ready((outs, h_out))
    outs_ref, h_ref = ref(x, jnp.zeros((B, HIDDEN), jnp.float32), params)
    assert outs.shape == (B, T, 1) and h_out.shape == (1, B, HIDDEN)
    assert jnp.allclose(outs, outs_ref, atol=2e-5), "outs mismatch (case 1)"
    assert jnp.allclose(h_out, h_ref, atol=2e-5), "h_state mismatch (case 1)"

    # Case 2: larger batch / sequence with a non-None carried hidden state.
    B2, T2 = 8, 16
    x2 = jax.random.normal(x2key, (B2, T2, INPUT_SIZE), jnp.float32)
    h_in = 0.1 * jax.random.normal(hkey, (1, B2, HIDDEN), jnp.float32)
    outs2, h_out2 = rnn_forward(x2, h_in, params)
    jax.block_until_ready((outs2, h_out2))
    outs2_ref, h2_ref = ref(x2, h_in[0], params)
    assert outs2.shape == (B2, T2, 1) and h_out2.shape == (1, B2, HIDDEN)
    assert jnp.allclose(outs2, outs2_ref, atol=2e-5), "outs mismatch (case 2)"
    assert jnp.allclose(h_out2, h2_ref, atol=2e-5), "h_state mismatch (case 2)"

    print("KERNEL_OK")
</pallas_src>

<mosaic_0001>
module attributes {stable_mosaic.version = 11 : i64} {
  func.func @rnn_kernel(%arg0: i32, %arg1: memref<8x2x1xf32, #tpu.memory_space<vmem>>, %arg2: memref<2x32xf32, #tpu.memory_space<vmem>>, %arg3: memref<1x1x32xf32, #tpu.memory_space<vmem>>, %arg4: memref<32x32xf32, #tpu.memory_space<vmem>>, %arg5: memref<1x1x32xf32, #tpu.memory_space<vmem>>, %arg6: memref<1x1x32xf32, #tpu.memory_space<vmem>>, %arg7: memref<1x1xf32, #tpu.memory_space<vmem>>, %arg8: memref<8x2xf32, #tpu.memory_space<vmem>>, %arg9: memref<2x32xf32, #tpu.memory_space<vmem>>, %arg10: memref<8x2x32xf32, #tpu.memory_space<vmem>>) attributes {dimension_semantics = [#tpu.dimension_semantics<arbitrary>], iteration_bounds = array<i64: 1>, scalar_prefetch = 0 : i64, scratch_operands = 1 : i64, tpu.core_type = #tpu.core_type<tc>, window_params = [{pipeline_mode = #tpu.pipeline_mode<synchronous>, transform_indices = @transform_0, window_bounds = array<i64: 8, 2, 1>}, {pipeline_mode = #tpu.pipeline_mode<synchronous>, transform_indices = @transform_1, window_bounds = array<i64: 2, 32>}, {pipeline_mode = #tpu.pipeline_mode<synchronous>, transform_indices = @transform_2, window_bounds = array<i64: 1, 1, 32>}, {pipeline_mode = #tpu.pipeline_mode<synchronous>, transform_indices = @transform_3, window_bounds = array<i64: 32, 32>}, {pipeline_mode = #tpu.pipeline_mode<synchronous>, transform_indices = @transform_4, window_bounds = array<i64: 1, 1, 32>}, {pipeline_mode = #tpu.pipeline_mode<synchronous>, transform_indices = @transform_5, window_bounds = array<i64: 1, 1, 32>}, {pipeline_mode = #tpu.pipeline_mode<synchronous>, transform_indices = @transform_6, window_bounds = array<i64: 1, 1>}, {pipeline_mode = #tpu.pipeline_mode<synchronous>, transform_indices = @transform_7, window_bounds = array<i64: 8, 2>}, {pipeline_mode = #tpu.pipeline_mode<synchronous>, transform_indices = @transform_8, window_bounds = array<i64: 2, 32>}]} {
    %c0 = arith.constant 0 : index
    %c0_0 = arith.constant 0 : index
    %c0_1 = arith.constant 0 : index
    %0 = vector.load %arg1[%c0, %c0_0, %c0_1] : memref<8x2x1xf32, #tpu.memory_space<vmem>>, vector<8x2x1xf32>
    %c0_2 = arith.constant 0 : index
    %c0_3 = arith.constant 0 : index
    %c0_4 = arith.constant 0 : index
    %1 = vector.load %arg3[%c0_2, %c0_3, %c0_4] : memref<1x1x32xf32, #tpu.memory_space<vmem>>, vector<1x1x32xf32>
    %2 = vector.broadcast %0 : vector<8x2x1xf32> to vector<8x2x32xf32>
    %3 = vector.broadcast %1 : vector<1x1x32xf32> to vector<8x2x32xf32>
    %4 = arith.mulf %2, %3 : vector<8x2x32xf32>
    %c0_5 = arith.constant 0 : index
    %c0_6 = arith.constant 0 : index
    %c0_7 = arith.constant 0 : index
    %5 = vector.load %arg5[%c0_5, %c0_6, %c0_7] : memref<1x1x32xf32, #tpu.memory_space<vmem>>, vector<1x1x32xf32>
    %6 = vector.broadcast %5 : vector<1x1x32xf32> to vector<8x2x32xf32>
    %7 = arith.addf %4, %6 : vector<8x2x32xf32>
    %c0_8 = arith.constant 0 : index
    %c0_9 = arith.constant 0 : index
    %c0_10 = arith.constant 0 : index
    %8 = vector.load %arg10[%c0_8, %c0_9, %c0_10] : memref<8x2x32xf32, #tpu.memory_space<vmem>>, vector<8x2x32xf32>
    tpu.vector_store %arg10[%c0_8, %c0_9, %c0_10], %7 {strides = array<i32>} : memref<8x2x32xf32, #tpu.memory_space<vmem>>, vector<8x2x32xf32>,
    %c0_11 = arith.constant 0 : index
    %c0_12 = arith.constant 0 : index
    %9 = vector.load %arg2[%c0_11, %c0_12] : memref<2x32xf32, #tpu.memory_space<vmem>>, vector<2x32xf32>
    %c0_i32 = arith.constant 0 : i32
    %10 = arith.index_cast %c0_i32 : i32 to index
    %c0_13 = arith.constant 0 : index
    %c0_14 = arith.constant 0 : index
    %11 = vector.load %arg10[%10, %c0_13, %c0_14] : memref<8x2x32xf32, #tpu.memory_space<vmem>>, vector<1x2x32xf32>
    %12 = vector.shape_cast %11 : vector<1x2x32xf32> to vector<2x32xf32>
    %c0_15 = arith.constant 0 : index
    %c0_16 = arith.constant 0 : index
    %13 = vector.load %arg4[%c0_15, %c0_16] : memref<32x32xf32, #tpu.memory_space<vmem>>, vector<32x32xf32>
    %cst = arith.constant dense<0.000000e+00> : vector<2x32xf32>
    %14 = tpu.matmul %9, %13, %cst {dimension_numbers = #tpu.dot_dimension_numbers<[1], [0], [0], [1], [0, 0, 1, 1], [], []>} : vector<2x32xf32>, vector<32x32xf32>, vector<2x32xf32> -> vector<2x32xf32>
    %15 = arith.addf %12, %14 : vector<2x32xf32>
    %16 = math.tanh %15 : vector<2x32xf32>
    %17 = arith.index_cast %c0_i32 : i32 to index
    %c0_17 = arith.constant 0 : index
    %c0_18 = arith.constant 0 : index
    %18 = vector.load %arg10[%17, %c0_17, %c0_18] : memref<8x2x32xf32, #tpu.memory_space<vmem>>, vector<1x2x32xf32>
    %19 = vector.shape_cast %18 : vector<1x2x32xf32> to vector<2x32xf32>
    %20 = vector.shape_cast %16 : vector<2x32xf32> to vector<1x2x32xf32>
    tpu.vector_store %arg10[%17, %c0_17, %c0_18], %20 {strides = array<i32>} : memref<8x2x32xf32, #tpu.memory_space<vmem>>, vector<1x2x32xf32>,
    %c1_i32 = arith.constant 1 : i32
    %21 = arith.index_cast %c1_i32 : i32 to index
    %c0_19 = arith.constant 0 : index
    %c0_20 = arith.constant 0 : index
    %22 = vector.load %arg10[%21, %c0_19, %c0_20] : memref<8x2x32xf32, #tpu.memory_space<vmem>>, vector<1x2x32xf32>
    %23 = vector.shape_cast %22 : vector<1x2x32xf32> to vector<2x32xf32>
    %c0_21 = arith.constant 0 : index
    %c0_22 = arith.constant 0 : index
    %24 = vector.load %arg4[%c0_21, %c0_22] : memref<32x32xf32, #tpu.memory_space<vmem>>, vector<32x32xf32>
    %cst_23 = arith.constant dense<0.000000e+00> : vector<2x32xf32>
    %25 = tpu.matmul %16, %24, %cst_23 {dimension_numbers = #tpu.dot_dimension_numbers<[1], [0], [0], [1], [0, 0, 1, 1], [], []>} : vector<2x32xf32>, vector<32x32xf32>, vector<2x32xf32> -> vector<2x32xf32>
    %26 = arith.addf %23, %25 : vector<2x32xf32>
    %27 = math.tanh %26 : vector<2x32xf32>
    %28 = arith.index_cast %c1_i32 : i32 to index
    %c0_24 = arith.constant 0 : index
    %c0_25 = arith.constant 0 : index
    %29 = vector.load %arg10[%28, %c0_24, %c0_25] : memref<8x2x32xf32, #tpu.memory_space<vmem>>, vector<1x2x32xf32>
    %30 = vector.shape_cast %29 : vector<1x2x32xf32> to vector<2x32xf32>
    %31 = vector.shape_cast %27 : vector<2x32xf32> to vector<1x2x32xf32>
    tpu.vector_store %arg10[%28, %c0_24, %c0_25], %31 {strides = array<i32>} : memref<8x2x32xf32, #tpu.memory_space<vmem>>, vector<1x2x32xf32>,
    %c2_i32 = arith.constant 2 : i32
    %32 = arith.index_cast %c2_i32 : i32 to index
    %c0_26 = arith.constant 0 : index
    %c0_27 = arith.constant 0 : index
    %33 = vector.load %arg10[%32, %c0_26, %c0_27] : memref<8x2x32xf32, #tpu.memory_space<vmem>>, vector<1x2x32xf32>
    %34 = vector.shape_cast %33 : vector<1x2x32xf32> to vector<2x32xf32>
    %c0_28 = arith.constant 0 : index
    %c0_29 = arith.constant 0 : index
    %35 = vector.load %arg4[%c0_28, %c0_29] : memref<32x32xf32, #tpu.memory_space<vmem>>, vector<32x32xf32>
    %cst_30 = arith.constant dense<0.000000e+00> : vector<2x32xf32>
    %36 = tpu.matmul %27, %35, %cst_30 {dimension_numbers = #tpu.dot_dimension_numbers<[1], [0], [0], [1], [0, 0, 1, 1], [], []>} : vector<2x32xf32>, vector<32x32xf32>, vector<2x32xf32> -> vector<2x32xf32>
    %37 = arith.addf %34, %36 : vector<2x32xf32>
    %38 = math.tanh %37 : vector<2x32xf32>
    %39 = arith.index_cast %c2_i32 : i32 to index
    %c0_31 = arith.constant 0 : index
    %c0_32 = arith.constant 0 : index
    %40 = vector.load %arg10[%39, %c0_31, %c0_32] : memref<8x2x32xf32, #tpu.memory_space<vmem>>, vector<1x2x32xf32>
    %41 = vector.shape_cast %40 : vector<1x2x32xf32> to vector<2x32xf32>
    %42 = vector.shape_cast %38 : vector<2x32xf32> to vector<1x2x32xf32>
    tpu.vector_store %arg10[%39, %c0_31, %c0_32], %42 {strides = array<i32>} : memref<8x2x32xf32, #tpu.memory_space<vmem>>, vector<1x2x32xf32>,
    %c3_i32 = arith.constant 3 : i32
    %43 = arith.index_cast %c3_i32 : i32 to index
    %c0_33 = arith.constant 0 : index
    %c0_34 = arith.constant 0 : index
    %44 = vector.load %arg10[%43, %c0_33, %c0_34] : memref<8x2x32xf32, #tpu.memory_space<vmem>>, vector<1x2x32xf32>
    %45 = vector.shape_cast %44 : vector<1x2x32xf32> to vector<2x32xf32>
    %c0_35 = arith.constant 0 : index
    %c0_36 = arith.constant 0 : index
    %46 = vector.load %arg4[%c0_35, %c0_36] : memref<32x32xf32, #tpu.memory_space<vmem>>, vector<32x32xf32>
    %cst_37 = arith.constant dense<0.000000e+00> : vector<2x32xf32>
    %47 = tpu.matmul %38, %46, %cst_37 {dimension_numbers = #tpu.dot_dimension_numbers<[1], [0], [0], [1], [0, 0, 1, 1], [], []>} : vector<2x32xf32>, vector<32x32xf32>, vector<2x32xf32> -> vector<2x32xf32>
    %48 = arith.addf %45, %47 : vector<2x32xf32>
    %49 = math.tanh %48 : vector<2x32xf32>
    %50 = arith.index_cast %c3_i32 : i32 to index
    %c0_38 = arith.constant 0 : index
    %c0_39 = arith.constant 0 : index
    %51 = vector.load %arg10[%50, %c0_38, %c0_39] : memref<8x2x32xf32, #tpu.memory_space<vmem>>, vector<1x2x32xf32>
    %52 = vector.shape_cast %51 : vector<1x2x32xf32> to vector<2x32xf32>
    %53 = vector.shape_cast %49 : vector<2x32xf32> to vector<1x2x32xf32>
    tpu.vector_store %arg10[%50, %c0_38, %c0_39], %53 {strides = array<i32>} : memref<8x2x32xf32, #tpu.memory_space<vmem>>, vector<1x2x32xf32>,
    %c4_i32 = arith.constant 4 : i32
    %54 = arith.index_cast %c4_i32 : i32 to index
    %c0_40 = arith.constant 0 : index
    %c0_41 = arith.constant 0 : index
    %55 = vector.load %arg10[%54, %c0_40, %c0_41] : memref<8x2x32xf32, #tpu.memory_space<vmem>>, vector<1x2x32xf32>
    %56 = vector.shape_cast %55 : vector<1x2x32xf32> to vector<2x32xf32>
    %c0_42 = arith.constant 0 : index
    %c0_43 = arith.constant 0 : index
    %57 = vector.load %arg4[%c0_42, %c0_43] : memref<32x32xf32, #tpu.memory_space<vmem>>, vector<32x32xf32>
    %cst_44 = arith.constant dense<0.000000e+00> : vector<2x32xf32>
    %58 = tpu.matmul %49, %57, %cst_44 {dimension_numbers = #tpu.dot_dimension_numbers<[1], [0], [0], [1], [0, 0, 1, 1], [], []>} : vector<2x32xf32>, vector<32x32xf32>, vector<2x32xf32> -> vector<2x32xf32>
    %59 = arith.addf %56, %58 : vector<2x32xf32>
    %60 = math.tanh %59 : vector<2x32xf32>
    %61 = arith.index_cast %c4_i32 : i32 to index
    %c0_45 = arith.constant 0 : index
    %c0_46 = arith.constant 0 : index
    %62 = vector.load %arg10[%61, %c0_45, %c0_46] : memref<8x2x32xf32, #tpu.memory_space<vmem>>, vector<1x2x32xf32>
    %63 = vector.shape_cast %62 : vector<1x2x32xf32> to vector<2x32xf32>
    %64 = vector.shape_cast %60 : vector<2x32xf32> to vector<1x2x32xf32>
    tpu.vector_store %arg10[%61, %c0_45, %c0_46], %64 {strides = array<i32>} : memref<8x2x32xf32, #tpu.memory_space<vmem>>, vector<1x2x32xf32>,
    %c5_i32 = arith.constant 5 : i32
    %65 = arith.index_cast %c5_i32 : i32 to index
    %c0_47 = arith.constant 0 : index
    %c0_48 = arith.constant 0 : index
    %66 = vector.load %arg10[%65, %c0_47, %c0_48] : memref<8x2x32xf32, #tpu.memory_space<vmem>>, vector<1x2x32xf32>
    %67 = vector.shape_cast %66 : vector<1x2x32xf32> to vector<2x32xf32>
    %c0_49 = arith.constant 0 : index
    %c0_50 = arith.constant 0 : index
    %68 = vector.load %arg4[%c0_49, %c0_50] : memref<32x32xf32, #tpu.memory_space<vmem>>, vector<32x32xf32>
    %cst_51 = arith.constant dense<0.000000e+00> : vector<2x32xf32>
    %69 = tpu.matmul %60, %68, %cst_51 {dimension_numbers = #tpu.dot_dimension_numbers<[1], [0], [0], [1], [0, 0, 1, 1], [], []>} : vector<2x32xf32>, vector<32x32xf32>, vector<2x32xf32> -> vector<2x32xf32>
    %70 = arith.addf %67, %69 : vector<2x32xf32>
    %71 = math.tanh %70 : vector<2x32xf32>
    %72 = arith.index_cast %c5_i32 : i32 to index
    %c0_52 = arith.constant 0 : index
    %c0_53 = arith.constant 0 : index
    %73 = vector.load %arg10[%72, %c0_52, %c0_53] : memref<8x2x32xf32, #tpu.memory_space<vmem>>, vector<1x2x32xf32>
    %74 = vector.shape_cast %73 : vector<1x2x32xf32> to vector<2x32xf32>
    %75 = vector.shape_cast %71 : vector<2x32xf32> to vector<1x2x32xf32>
    tpu.vector_store %arg10[%72, %c0_52, %c0_53], %75 {strides = array<i32>} : memref<8x2x32xf32, #tpu.memory_space<vmem>>, vector<1x2x32xf32>,
    %c6_i32 = arith.constant 6 : i32
    %76 = arith.index_cast %c6_i32 : i32 to index
    %c0_54 = arith.constant 0 : index
    %c0_55 = arith.constant 0 : index
    %77 = vector.load %arg10[%76, %c0_54, %c0_55] : memref<8x2x32xf32, #tpu.memory_space<vmem>>, vector<1x2x32xf32>
    %78 = vector.shape_cast %77 : vector<1x2x32xf32> to vector<2x32xf32>
    %c0_56 = arith.constant 0 : index
    %c0_57 = arith.constant 0 : index
    %79 = vector.load %arg4[%c0_56, %c0_57] : memref<32x32xf32, #tpu.memory_space<vmem>>, vector<32x32xf32>
    %cst_58 = arith.constant dense<0.000000e+00> : vector<2x32xf32>
    %80 = tpu.matmul %71, %79, %cst_58 {dimension_numbers = #tpu.dot_dimension_numbers<[1], [0], [0], [1], [0, 0, 1, 1], [], []>} : vector<2x32xf32>, vector<32x32xf32>, vector<2x32xf32> -> vector<2x32xf32>
    %81 = arith.addf %78, %80 : vector<2x32xf32>
    %82 = math.tanh %81 : vector<2x32xf32>
    %83 = arith.index_cast %c6_i32 : i32 to index
    %c0_59 = arith.constant 0 : index
    %c0_60 = arith.constant 0 : index
    %84 = vector.load %arg10[%83, %c0_59, %c0_60] : memref<8x2x32xf32, #tpu.memory_space<vmem>>, vector<1x2x32xf32>
    %85 = vector.shape_cast %84 : vector<1x2x32xf32> to vector<2x32xf32>
    %86 = vector.shape_cast %82 : vector<2x32xf32> to vector<1x2x32xf32>
    tpu.vector_store %arg10[%83, %c0_59, %c0_60], %86 {strides = array<i32>} : memref<8x2x32xf32, #tpu.memory_space<vmem>>, vector<1x2x32xf32>,
    %c7_i32 = arith.constant 7 : i32
    %87 = arith.index_cast %c7_i32 : i32 to index
    %c0_61 = arith.constant 0 : index
    %c0_62 = arith.constant 0 : index
    %88 = vector.load %arg10[%87, %c0_61, %c0_62] : memref<8x2x32xf32, #tpu.memory_space<vmem>>, vector<1x2x32xf32>
    %89 = vector.shape_cast %88 : vector<1x2x32xf32> to vector<2x32xf32>
    %c0_63 = arith.constant 0 : index
    %c0_64 = arith.constant 0 : index
    %90 = vector.load %arg4[%c0_63, %c0_64] : memref<32x32xf32, #tpu.memory_space<vmem>>, vector<32x32xf32>
    %cst_65 = arith.constant dense<0.000000e+00> : vector<2x32xf32>
    %91 = tpu.matmul %82, %90, %cst_65 {dimension_numbers = #tpu.dot_dimension_numbers<[1], [0], [0], [1], [0, 0, 1, 1], [], []>} : vector<2x32xf32>, vector<32x32xf32>, vector<2x32xf32> -> vector<2x32xf32>
    %92 = arith.addf %89, %91 : vector<2x32xf32>
    %93 = math.tanh %92 : vector<2x32xf32>
    %94 = arith.index_cast %c7_i32 : i32 to index
    %c0_66 = arith.constant 0 : index
    %c0_67 = arith.constant 0 : index
    %95 = vector.load %arg10[%94, %c0_66, %c0_67] : memref<8x2x32xf32, #tpu.memory_space<vmem>>, vector<1x2x32xf32>
    %96 = vector.shape_cast %95 : vector<1x2x32xf32> to vector<2x32xf32>
    %97 = vector.shape_cast %93 : vector<2x32xf32> to vector<1x2x32xf32>
    tpu.vector_store %arg10[%94, %c0_66, %c0_67], %97 {strides = array<i32>} : memref<8x2x32xf32, #tpu.memory_space<vmem>>, vector<1x2x32xf32>,
    %c8_i32 = arith.constant 8 : i32
    %c0_68 = arith.constant 0 : index
    %c0_69 = arith.constant 0 : index
    %98 = vector.load %arg9[%c0_68, %c0_69] : memref<2x32xf32, #tpu.memory_space<vmem>>, vector<2x32xf32>
    tpu.vector_store %arg9[%c0_68, %c0_69], %93 {strides = array<i32>} : memref<2x32xf32, #tpu.memory_space<vmem>>, vector<2x32xf32>,
    %c0_70 = arith.constant 0 : index
    %c0_71 = arith.constant 0 : index
    %c0_72 = arith.constant 0 : index
    %99 = vector.load %arg10[%c0_70, %c0_71, %c0_72] : memref<8x2x32xf32, #tpu.memory_space<vmem>>, vector<8x2x32xf32>
    %c0_73 = arith.constant 0 : index
    %c0_74 = arith.constant 0 : index
    %c0_75 = arith.constant 0 : index
    %100 = vector.load %arg6[%c0_73, %c0_74, %c0_75] : memref<1x1x32xf32, #tpu.memory_space<vmem>>, vector<1x1x32xf32>
    %101 = vector.broadcast %100 : vector<1x1x32xf32> to vector<8x2x32xf32>
    %102 = arith.mulf %99, %101 : vector<8x2x32xf32>
    %cst_76 = arith.constant dense<0.000000e+00> : vector<8x2xf32>
    %103 = vector.multi_reduction <add>, %102, %cst_76 [2] : vector<8x2x32xf32> to vector<8x2xf32>
    %c0_77 = arith.constant 0 : index
    %c0_78 = arith.constant 0 : index
    %104 = vector.load %arg7[%c0_77, %c0_78] : memref<1x1xf32, #tpu.memory_space<vmem>>, vector<1x1xf32>
    %105 = vector.broadcast %104 : vector<1x1xf32> to vector<8x2xf32>
    %106 = arith.addf %103, %105 : vector<8x2xf32>
    %c0_79 = arith.constant 0 : index
    %c0_80 = arith.constant 0 : index
    %107 = vector.load %arg8[%c0_79, %c0_80] : memref<8x2xf32, #tpu.memory_space<vmem>>, vector<8x2xf32>
    tpu.vector_store %arg8[%c0_79, %c0_80], %106 {strides = array<i32>} : memref<8x2xf32, #tpu.memory_space<vmem>>, vector<8x2xf32>,
    return
  }
  func.func @transform_0(%arg0: i32) -> (i32, i32, i32) {
    %c0_i32 = arith.constant 0 : i32
    %c0_i32_0 = arith.constant 0 : i32
    %c0_i32_1 = arith.constant 0 : i32
    %c0_i32_2 = arith.constant 0 : i32
    return %c0_i32, %c0_i32_0, %c0_i32_1 : i32, i32, i32
  }
  func.func @transform_1(%arg0: i32) -> (i32, i32) {
    %c0_i32 = arith.constant 0 : i32
    %c0_i32_0 = arith.constant 0 : i32
    %c0_i32_1 = arith.constant 0 : i32
    return %c0_i32, %c0_i32_0 : i32, i32
  }
  func.func @transform_2(%arg0: i32) -> (i32, i32, i32) {
    %c0_i32 = arith.constant 0 : i32
    %c0_i32_0 = arith.constant 0 : i32
    %c0_i32_1 = arith.constant 0 : i32
    %c0_i32_2 = arith.constant 0 : i32
    return %c0_i32, %c0_i32_0, %c0_i32_1 : i32, i32, i32
  }
  func.func @transform_3(%arg0: i32) -> (i32, i32) {
    %c0_i32 = arith.constant 0 : i32
    %c0_i32_0 = arith.constant 0 : i32
    %c0_i32_1 = arith.constant 0 : i32
    return %c0_i32, %c0_i32_0 : i32, i32
  }
  func.func @transform_4(%arg0: i32) -> (i32, i32, i32) {
    %c0_i32 = arith.constant 0 : i32
    %c0_i32_0 = arith.constant 0 : i32
    %c0_i32_1 = arith.constant 0 : i32
    %c0_i32_2 = arith.constant 0 : i32
    return %c0_i32, %c0_i32_0, %c0_i32_1 : i32, i32, i32
  }
  func.func @transform_5(%arg0: i32) -> (i32, i32, i32) {
    %c0_i32 = arith.constant 0 : i32
    %c0_i32_0 = arith.constant 0 : i32
    %c0_i32_1 = arith.constant 0 : i32
    %c0_i32_2 = arith.constant 0 : i32
    return %c0_i32, %c0_i32_0, %c0_i32_1 : i32, i32, i32
  }
  func.func @transform_6(%arg0: i32) -> (i32, i32) {
    %c0_i32 = arith.constant 0 : i32
    %c0_i32_0 = arith.constant 0 : i32
    %c0_i32_1 = arith.constant 0 : i32
    return %c0_i32, %c0_i32_0 : i32, i32
  }
  func.func @transform_7(%arg0: i32) -> (i32, i32) {
    %c0_i32 = arith.constant 0 : i32
    %c0_i32_0 = arith.constant 0 : i32
    %c0_i32_1 = arith.constant 0 : i32
    return %c0_i32, %c0_i32_0 : i32, i32
  }
  func.func @transform_8(%arg0: i32) -> (i32, i32) {
    %c0_i32 = arith.constant 0 : i32
    %c0_i32_0 = arith.constant 0 : i32
    %c0_i32_1 = arith.constant 0 : i32
    return %c0_i32, %c0_i32_0 : i32, i32
  }
}

</mosaic_0001>

<llo_original>
// kernel: tpu_custom_call.1
$region0: #{tpu_custom_call.1}
  #allocation0 [shape = 'u32[]', space=smem, size = 0x4, offset = 0x4, fixed_abs, tag = 'smem constant byte address 0x4 - core index']
  #allocation1 [shape = 'u32[72,128]{1,0:T(1,128)}', space=vmem, size = 0x9000, scoped, tag = 'internal scratch']
  #allocation2 [shape = 'f32[8,2,32]{2,1,0:T(2,128)}', space=vmem, size = 0x2000, scoped, tag = 'scratch operand']
  #allocation3 [shape = 'f32[1,1]{1,0:T(1,128)S(1)}', space=vmem, size = 0x200, scoped, tag = 'scoped memory for tpu_custom_call.1']
  %s0 = inlined_call_operand.vmem [shape: f32[8,2,1], index: 0, kind: input, shape index: {}]
  %s1 = inlined_call_operand.vmem [shape: f32[2,32], index: 1, kind: input, shape index: {}]
  %s2 = inlined_call_operand.vmem [shape: f32[1,1,32], index: 2, kind: input, shape index: {}]
  %s3 = inlined_call_operand.hbm [shape: f32[32,32], index: 3, kind: input, shape index: {}]
  %s4 = inlined_call_operand.vmem [shape: f32[1,1,32], index: 4, kind: input, shape index: {}]
  %s5 = inlined_call_operand.vmem [shape: f32[1,1,32], index: 5, kind: input, shape index: {}]
  %s6 = inlined_call_operand.<no memory space> [shape: f32[1,1], index: 6, kind: input, shape index: {}]
  %s7 = inlined_call_operand.vmem [shape: f32[8,2], index: 7, kind: output, shape index: {0}]
  %s8 = inlined_call_operand.hbm [shape: f32[2,32], index: 8, kind: output, shape index: {1}]
  %9 = xla_tuple %s7, %s8
  %s10 = sld [smem:[#allocation0]]
  $region50: #{tpu_custom_call.1} parent=0
    _
  %s12 = ssub.s32 1, %s10
  %s13 = scalar_select 0, %s12, %s10
  %v14 = vstv %s6
  %15 = vst [vmem:[#allocation3] sm:$0x1] %v14
  $region1: #{tpu_custom_call.1} parent=0
    #allocation4 [shape = 'u8[16384]{0}', space=vmem, size = 0x4000, scoped, tag = 'input window, operand 3, single buffered']
    #allocation5 [shape = 's32[1]{0}', space=sflag, size = 0x4, scoped, tag = 'scoped memory for tpu_custom_call.1']
    #allocation6 [shape = 's32[1]{0}', space=sflag, size = 0x4, scoped, tag = 'scoped memory for tpu_custom_call.1']
    #allocation7 [shape = 'u8[1024]{0}', space=vmem, size = 0x400, scoped, tag = 'output window, operand 1, single buffered']
    %16 = vsyncpa [#allocation5], 0
    %17 = vsyncpa [#allocation6], 0
    // Predicated region
    $region2: #{tpu_custom_call.1} parent=1 // pred_check
      _
    $region3: #{tpu_custom_call.1} parent=1 // pred_check_branch
      %19 = sbr.rel (0) target = $region5
    $region4: #{tpu_custom_call.1} parent=1 // pred_region
      _
    $region5: #{tpu_custom_call.1} parent=1 // pred_fallthru
      _
    // Predicated region
    $region6: #{tpu_custom_call.1} parent=1 // pred_check
      _
    $region7: #{tpu_custom_call.1} parent=1 // pred_check_branch
      %21 = sbr.rel (0) target = $region9
    $region8: #{tpu_custom_call.1} parent=1 // pred_region
      _
    $region9: #{tpu_custom_call.1} parent=1 // pred_fallthru
      _
    // Predicated region
    $region10: #{tpu_custom_call.1} parent=1 // pred_check
      _
    $region11: #{tpu_custom_call.1} parent=1 // pred_check_branch
      %23 = sbr.rel (0) target = $region13
    $region12: #{tpu_custom_call.1} parent=1 // pred_region
      _
    $region13: #{tpu_custom_call.1} parent=1 // pred_fallthru
      _
    // Predicated region
    $region14: #{tpu_custom_call.1} parent=1 // pred_check
      _
    $region15: #{tpu_custom_call.1} parent=1 // pred_check_branch
      %25 = sbr.rel (0) target = $region17
    $region16: #{tpu_custom_call.1} parent=1 // pred_region
      %27 = vsyncadd [#allocation5], 0
      %s28 = sshll.u32 %s3, 4
      %s29 = int_to_ptr.hbm [resolvable:$true] %s28
      %s30 = sshll.u32 [#allocation4], 4
      %s31 = int_to_ptr.vmem [resolvable:$true] %s30
      %36 = dma.hbm_to_vmem [thread:$0]  %s29, 512, %s31, [#allocation5], 128, 128, 8
    $region17: #{tpu_custom_call.1} parent=1 // pred_fallthru
      _
    // Predicated region
    $region18: #{tpu_custom_call.1} parent=1 // pred_check
      _
    $region19: #{tpu_custom_call.1} parent=1 // pred_check_branch
      %38 = sbr.rel (0) target = $region21
    $region20: #{tpu_custom_call.1} parent=1 // pred_region
      _
    $region21: #{tpu_custom_call.1} parent=1 // pred_fallthru
      _
    // Predicated region
    $region22: #{tpu_custom_call.1} parent=1 // pred_check
      _
    $region23: #{tpu_custom_call.1} parent=1 // pred_check_branch
      %40 = sbr.rel (0) target = $region25
    $region24: #{tpu_custom_call.1} parent=1 // pred_region
      _
    $region25: #{tpu_custom_call.1} parent=1 // pred_fallthru
      _
    // Predicated region
    $region26: #{tpu_custom_call.1} parent=1 // pred_check
      _
    $region27: #{tpu_custom_call.1} parent=1 // pred_check_branch
      %42 = sbr.rel (0) target = $region29
    $region28: #{tpu_custom_call.1} parent=1 // pred_region
      _
    $region29: #{tpu_custom_call.1} parent=1 // pred_fallthru
      _
    // Predicated region
    $region30: #{tpu_custom_call.1} parent=1 // pred_check
      _
    $region31: #{tpu_custom_call.1} parent=1 // pred_check_branch
      %44 = sbr.rel (0) target = $region33
    $region32: #{tpu_custom_call.1} parent=1 // pred_region
      %46 = dma.done [#allocation5], 512
    $region33: #{tpu_custom_call.1} parent=1 // pred_fallthru
      _
    %v47 = vld [vmem:[%s0] sm:$0x3]
    %v48 = vld [vmem:[%s0 + $0x2] sm:$0x3]
    %v49 = vld [vmem:[%s0 + $0x4] sm:$0x3]
    %v50 = vld [vmem:[%s0 + $0x6] sm:$0x3]
    %v51 = vld [vmem:[%s0 + $0x8] sm:$0x3]
    %v52 = vld [vmem:[%s0 + $0xa] sm:$0x3]
    %v53 = vld [vmem:[%s0 + $0xc] sm:$0x3]
    %v54 = vld [vmem:[%s0 + $0xe] sm:$0x3]
    %v55 = vld [vmem:[%s2] sm:$0x1]
    %57 = vset.pattern.permute.xlu0 0
    %58 = vperm.xlu0 %57, %v47
    %v59 = vpop.permute.xlu0 %58
    %62 = vset.pattern.permute.xlu0 0
    %63 = vperm.xlu0 %62, %v48
    %v64 = vpop.permute.xlu0 %63
    %67 = vset.pattern.permute.xlu0 0
    %68 = vperm.xlu0 %67, %v49
    %v69 = vpop.permute.xlu0 %68
    %72 = vset.pattern.permute.xlu0 0
    %73 = vperm.xlu0 %72, %v50
    %v74 = vpop.permute.xlu0 %73
    %77 = vset.pattern.permute.xlu0 0
    %78 = vperm.xlu0 %77, %v51
    %v79 = vpop.permute.xlu0 %78
    %82 = vset.pattern.permute.xlu0 0
    %83 = vperm.xlu0 %82, %v52
    %v84 = vpop.permute.xlu0 %83
    %87 = vset.pattern.permute.xlu0 0
    %88 = vperm.xlu0 %87, %v53
    %v89 = vpop.permute.xlu0 %88
    %92 = vset.pattern.permute.xlu0 0
    %93 = vperm.xlu0 %92, %v54
    %v94 = vpop.permute.xlu0 %93
    %v97 = vperm.slane %v55, 0
    %v99 = vmul.f32 %v59, %v97
    %v100 = vmul.f32 %v64, %v97
    %v101 = vmul.f32 %v69, %v97
    %v102 = vmul.f32 %v74, %v97
    %v103 = vmul.f32 %v79, %v97
    %v104 = vmul.f32 %v84, %v97
    %v105 = vmul.f32 %v89, %v97
    %v106 = vmul.f32 %v94, %v97
    %v107 = vld [vmem:[%s4] sm:$0x1]
    %v109 = vperm.slane %v107, 0
    %v111 = vadd.f32 %v99, %v109
    %v112 = vadd.f32 %v100, %v109
    %v113 = vadd.f32 %v101, %v109
    %v114 = vadd.f32 %v102, %v109
    %v115 = vadd.f32 %v103, %v109
    %v116 = vadd.f32 %v104, %v109
    %v117 = vadd.f32 %v105, %v109
    %v118 = vadd.f32 %v106, %v109
    %vm119 = vcmask 254976
    %120 = vst.msk [vmem:[#allocation2] sm:$0x3] %vm119, %v111
    %121 = vst.msk [vmem:[#allocation2 + $0x2] sm:$0x3] %vm119, %v112
    %122 = vst.msk [vmem:[#allocation2 + $0x4] sm:$0x3] %vm119, %v113
    %123 = vst.msk [vmem:[#allocation2 + $0x6] sm:$0x3] %vm119, %v114
    %124 = vst.msk [vmem:[#allocation2 + $0x8] sm:$0x3] %vm119, %v115
    %125 = vst.msk [vmem:[#allocation2 + $0xa] sm:$0x3] %vm119, %v116
    %126 = vst.msk [vmem:[#allocation2 + $0xc] sm:$0x3] %vm119, %v117
    %127 = vst.msk [vmem:[#allocation2 + $0xe] sm:$0x3] %vm119, %v118
    %v128 = vld [vmem:[%s1] sm:$0x3]
    %v129 = vld [vmem:[#allocation2] sm:$0x3]
    %v130 = vld [vmem:[#allocation4] sm:$0xff]
    %v131 = vld [vmem:[#allocation4 + $0x8] sm:$0xff]
    %v132 = vld [vmem:[#allocation4 + $0x10] sm:$0xff]
    %v133 = vld [vmem:[#allocation4 + $0x18] sm:$0xff]
    %vm134 = vcmask 261120
    %v136 = vsel %vm134, %v128, 0
    %138 = vmatpush.msra.mxu0 0.0
    %139 = vmatpush.msra.mxu0 0.0
    %140 = vmatpush.msra.mxu0 0.0
    %141 = vmatpush.msra.mxu0 0.0
    %142 = vmatpush.msra.mxu0 0.0
    %143 = vmatpush.msra.mxu0 0.0
    %144 = vmatpush.msra.mxu0 0.0
    %145 = vmatpush.msra.mxu0 0.0
    %146 = vmatpush.msra.mxu0 0.0
    %147 = vmatpush.msra.mxu0 0.0
    %148 = vmatpush.msra.mxu0 0.0
    %149 = vmatpush.msra.mxu0 0.0
    %150 = vmatpush.msra.mxu0 %v133
    %151 = vmatpush.msra.mxu0 %v132
    %152 = vmatpush.msra.mxu0 %v131
    %153 = vmatpush.msra.mxu0 %v130
    %154 = vmatmul.f32.gmra.mxu0 %v136
    %v155 = vpop.f32.mrf.mxu0
    %v156 = vadd.f32 0.0, %v155
    %157 = vdwg.mxu0
    %v158 = vadd.f32 %v129, %v156
    %v159 = vtanh.pop %v158
    %160 = vst.msk [vmem:[#allocation2] sm:$0x3] %vm119, %v159
    %s161 = scalar_lea.vmem [#allocation2], 2
    %v162 = vld [vmem:[%s161] sm:$0x3]
    %v163 = vld [vmem:[#allocation4] sm:$0xff]
    %v164 = vld [vmem:[#allocation4 + $0x8] sm:$0xff]
    %v165 = vld [vmem:[#allocation4 + $0x10] sm:$0xff]
    %v166 = vld [vmem:[#allocation4 + $0x18] sm:$0xff]
    %v168 = vsel %vm134, %v159, 0
    %170 = vmatpush.msra.mxu0 0.0
    %171 = vmatpush.msra.mxu0 0.0
    %172 = vmatpush.msra.mxu0 0.0
    %173 = vmatpush.msra.mxu0 0.0
    %174 = vmatpush.msra.mxu0 0.0
    %175 = vmatpush.msra.mxu0 0.0
    %176 = vmatpush.msra.mxu0 0.0
    %177 = vmatpush.msra.mxu0 0.0
    %178 = vmatpush.msra.mxu0 0.0
    %179 = vmatpush.msra.mxu0 0.0
    %180 = vmatpush.msra.mxu0 0.0
    %181 = vmatpush.msra.mxu0 0.0
    %182 = vmatpush.msra.mxu0 %v166
    %183 = vmatpush.msra.mxu0 %v165
    %184 = vmatpush.msra.mxu0 %v164
    %185 = vmatpush.msra.mxu0 %v163
    %186 = vmatmul.f32.gmra.mxu0 %v168
    %v187 = vpop.f32.mrf.mxu0
    %v188 = vadd.f32 0.0, %v187
    %189 = vdwg.mxu0
    %v190 = vadd.f32 %v162, %v188
    %v191 = vtanh.pop %v190
    %192 = vst.msk [vmem:[%s161] sm:$0x3] %vm119, %v191
    %s193 = scalar_lea.vmem [#allocation2], 4
    %v194 = vld [vmem:[%s193] sm:$0x3]
    %v195 = vld [vmem:[#allocation4] sm:$0xff]
    %v196 = vld [vmem:[#allocation4 + $0x8] sm:$0xff]
    %v197 = vld [vmem:[#allocation4 + $0x10] sm:$0xff]
    %v198 = vld [vmem:[#allocation4 + $0x18] sm:$0xff]
    %v200 = vsel %vm134, %v191, 0
    %202 = vmatpush.msra.mxu0 0.0
    %203 = vmatpush.msra.mxu0 0.0
    %204 = vmatpush.msra.mxu0 0.0
    %205 = vmatpush.msra.mxu0 0.0
    %206 = vmatpush.msra.mxu0 0.0
    %207 = vmatpush.msra.mxu0 0.0
    %208 = vmatpush.msra.mxu0 0.0
    %209 = vmatpush.msra.mxu0 0.0
    %210 = vmatpush.msra.mxu0 0.0
    %211 = vmatpush.msra.mxu0 0.0
    %212 = vmatpush.msra.mxu0 0.0
    %213 = vmatpush.msra.mxu0 0.0
    %214 = vmatpush.msra.mxu0 %v198
    %215 = vmatpush.msra.mxu0 %v197
    %216 = vmatpush.msra.mxu0 %v196
    %217 = vmatpush.msra.mxu0 %v195
    %218 = vmatmul.f32.gmra.mxu0 %v200
    %v219 = vpop.f32.mrf.mxu0
    %v220 = vadd.f32 0.0, %v219
    %221 = vdwg.mxu0
    %v222 = vadd.f32 %v194, %v220
    %v223 = vtanh.pop %v222
    %224 = vst.msk [vmem:[%s193] sm:$0x3] %vm119, %v223
    %s225 = scalar_lea.vmem [#allocation2], 6
    %v226 = vld [vmem:[%s225] sm:$0x3]
    %v227 = vld [vmem:[#allocation4] sm:$0xff]
    %v228 = vld [vmem:[#allocation4 + $0x8] sm:$0xff]
    %v229 = vld [vmem:[#allocation4 + $0x10] sm:$0xff]
    %v230 = vld [vmem:[#allocation4 + $0x18] sm:$0xff]
    %v232 = vsel %vm134, %v223, 0
    %234 = vmatpush.msra.mxu0 0.0
    %235 = vmatpush.msra.mxu0 0.0
    %236 = vmatpush.msra.mxu0 0.0
    %237 = vmatpush.msra.mxu0 0.0
    %238 = vmatpush.msra.mxu0 0.0
    %239 = vmatpush.msra.mxu0 0.0
    %240 = vmatpush.msra.mxu0 0.0
    %241 = vmatpush.msra.mxu0 0.0
    %242 = vmatpush.msra.mxu0 0.0
    %243 = vmatpush.msra.mxu0 0.0
    %244 = vmatpush.msra.mxu0 0.0
    %245 = vmatpush.msra.mxu0 0.0
    %246 = vmatpush.msra.mxu0 %v230
    %247 = vmatpush.msra.mxu0 %v229
    %248 = vmatpush.msra.mxu0 %v228
    %249 = vmatpush.msra.mxu0 %v227
    %250 = vmatmul.f32.gmra.mxu0 %v232
    %v251 = vpop.f32.mrf.mxu0
    %v252 = vadd.f32 0.0, %v251
    %253 = vdwg.mxu0
    %v254 = vadd.f32 %v226, %v252
    %v255 = vtanh.pop %v254
    %256 = vst.msk [vmem:[%s225] sm:$0x3] %vm119, %v255
    %s257 = scalar_lea.vmem [#allocation2], 8
    %v258 = vld [vmem:[%s257] sm:$0x3]
    %v259 = vld [vmem:[#allocation4] sm:$0xff]
    %v260 = vld [vmem:[#allocation4 + $0x8] sm:$0xff]
    %v261 = vld [vmem:[#allocation4 + $0x10] sm:$0xff]
    %v262 = vld [vmem:[#allocation4 + $0x18] sm:$0xff]
    %v264 = vsel %vm134, %v255, 0
    %266 = vmatpush.msra.mxu0 0.0
    %267 = vmatpush.msra.mxu0 0.0
    %268 = vmatpush.msra.mxu0 0.0
    %269 = vmatpush.msra.mxu0 0.0
    %270 = vmatpush.msra.mxu0 0.0
    %271 = vmatpush.msra.mxu0 0.0
    %272 = vmatpush.msra.mxu0 0.0
    %273 = vmatpush.msra.mxu0 0.0
    %274 = vmatpush.msra.mxu0 0.0
    %275 = vmatpush.msra.mxu0 0.0
    %276 = vmatpush.msra.mxu0 0.0
    %277 = vmatpush.msra.mxu0 0.0
    %278 = vmatpush.msra.mxu0 %v262
    %279 = vmatpush.msra.mxu0 %v261
    %280 = vmatpush.msra.mxu0 %v260
    %281 = vmatpush.msra.mxu0 %v259
    %282 = vmatmul.f32.gmra.mxu0 %v264
    %v283 = vpop.f32.mrf.mxu0
    %v284 = vadd.f32 0.0, %v283
    %285 = vdwg.mxu0
    %v286 = vadd.f32 %v258, %v284
    %v287 = vtanh.pop %v286
    %288 = vst.msk [vmem:[%s257] sm:$0x3] %vm119, %v287
    %s289 = scalar_lea.vmem [#allocation2], 10
    %v290 = vld [vmem:[%s289] sm:$0x3]
    %v291 = vld [vmem:[#allocation4] sm:$0xff]
    %v292 = vld [vmem:[#allocation4 + $0x8] sm:$0xff]
    %v293 = vld [vmem:[#allocation4 + $0x10] sm:$0xff]
    %v294 = vld [vmem:[#allocation4 + $0x18] sm:$0xff]
    %v296 = vsel %vm134, %v287, 0
    %298 = vmatpush.msra.mxu0 0.0
    %299 = vmatpush.msra.mxu0 0.0
    %300 = vmatpush.msra.mxu0 0.0
    %301 = vmatpush.msra.mxu0 0.0
    %302 = vmatpush.msra.mxu0 0.0
    %303 = vmatpush.msra.mxu0 0.0
    %304 = vmatpush.msra.mxu0 0.0
    %305 = vmatpush.msra.mxu0 0.0
    %306 = vmatpush.msra.mxu0 0.0
    %307 = vmatpush.msra.mxu0 0.0
    %308 = vmatpush.msra.mxu0 0.0
    %309 = vmatpush.msra.mxu0 0.0
    %310 = vmatpush.msra.mxu0 %v294
    %311 = vmatpush.msra.mxu0 %v293
    %312 = vmatpush.msra.mxu0 %v292
    %313 = vmatpush.msra.mxu0 %v291
    %314 = vmatmul.f32.gmra.mxu0 %v296
    %v315 = vpop.f32.mrf.mxu0
    %v316 = vadd.f32 0.0, %v315
    %317 = vdwg.mxu0
    %v318 = vadd.f32 %v290, %v316
    %v319 = vtanh.pop %v318
    %320 = vst.msk [vmem:[%s289] sm:$0x3] %vm119, %v319
    %s321 = scalar_lea.vmem [#allocation2], 12
    %v322 = vld [vmem:[%s321] sm:$0x3]
    %v323 = vld [vmem:[#allocation4] sm:$0xff]
    %v324 = vld [vmem:[#allocation4 + $0x8] sm:$0xff]
    %v325 = vld [vmem:[#allocation4 + $0x10] sm:$0xff]
    %v326 = vld [vmem:[#allocation4 + $0x18] sm:$0xff]
    %v328 = vsel %vm134, %v319, 0
    %330 = vmatpush.msra.mxu0 0.0
    %331 = vmatpush.msra.mxu0 0.0
    %332 = vmatpush.msra.mxu0 0.0
    %333 = vmatpush.msra.mxu0 0.0
    %334 = vmatpush.msra.mxu0 0.0
    %335 = vmatpush.msra.mxu0 0.0
    %336 = vmatpush.msra.mxu0 0.0
    %337 = vmatpush.msra.mxu0 0.0
    %338 = vmatpush.msra.mxu0 0.0
    %339 = vmatpush.msra.mxu0 0.0
    %340 = vmatpush.msra.mxu0 0.0
    %341 = vmatpush.msra.mxu0 0.0
    %342 = vmatpush.msra.mxu0 %v326
    %343 = vmatpush.msra.mxu0 %v325
    %344 = vmatpush.msra.mxu0 %v324
    %345 = vmatpush.msra.mxu0 %v323
    %346 = vmatmul.f32.gmra.mxu0 %v328
    %v347 = vpop.f32.mrf.mxu0
    %v348 = vadd.f32 0.0, %v347
    %349 = vdwg.mxu0
    %v350 = vadd.f32 %v322, %v348
    %v351 = vtanh.pop %v350
    %352 = vst.msk [vmem:[%s321] sm:$0x3] %vm119, %v351
    %s353 = scalar_lea.vmem [#allocation2], 14
    %v354 = vld [vmem:[%s353] sm:$0x3]
    %v355 = vld [vmem:[#allocation4] sm:$0xff]
    %v356 = vld [vmem:[#allocation4 + $0x8] sm:$0xff]
    %v357 = vld [vmem:[#allocation4 + $0x10] sm:$0xff]
    %v358 = vld [vmem:[#allocation4 + $0x18] sm:$0xff]
    %v360 = vsel %vm134, %v351, 0
    %362 = vmatpush.msra.mxu0 0.0
    %363 = vmatpush.msra.mxu0 0.0
    %364 = vmatpush.msra.mxu0 0.0
    %365 = vmatpush.msra.mxu0 0.0
    %366 = vmatpush.msra.mxu0 0.0
    %367 = vmatpush.msra.mxu0 0.0
    %368 = vmatpush.msra.mxu0 0.0
    %369 = vmatpush.msra.mxu0 0.0
    %370 = vmatpush.msra.mxu0 0.0
    %371 = vmatpush.msra.mxu0 0.0
    %372 = vmatpush.msra.mxu0 0.0
    %373 = vmatpush.msra.mxu0 0.0
    %374 = vmatpush.msra.mxu0 %v358
    %375 = vmatpush.msra.mxu0 %v357
    %376 = vmatpush.msra.mxu0 %v356
    %377 = vmatpush.msra.mxu0 %v355
    %378 = vmatmul.f32.gmra.mxu0 %v360
    %v379 = vpop.f32.mrf.mxu0
    %v380 = vadd.f32 0.0, %v379
    %381 = vdwg.mxu0
    %v382 = vadd.f32 %v354, %v380
    %v383 = vtanh.pop %v382
    %384 = vst.msk [vmem:[%s353] sm:$0x3] %vm119, %v383
    %385 = vst.msk [vmem:[#allocation7] sm:$0x3] %vm119, %v383
    %v386 = vld [vmem:[#allocation2] sm:$0x3]
    %v387 = vld [vmem:[#allocation2 + $0x2] sm:$0x3]
    %v388 = vld [vmem:[#allocation2 + $0x4] sm:$0x3]
    %v389 = vld [vmem:[#allocation2 + $0x6] sm:$0x3]
    %v390 = vld [vmem:[#allocation2 + $0x8] sm:$0x3]
    %v391 = vld [vmem:[#allocation2 + $0xa] sm:$0x3]
    %v392 = vld [vmem:[#allocation2 + $0xc] sm:$0x3]
    %v393 = vld [vmem:[#allocation2 + $0xe] sm:$0x3]
    %v394 = vld [vmem:[%s5] sm:$0x1]
    %v396 = vperm.slane %v394, 0
    %v398 = vmul.f32 %v386, %v396
    %v399 = vmul.f32 %v387, %v396
    %v400 = vmul.f32 %v388, %v396
    %v401 = vmul.f32 %v389, %v396
    %v402 = vmul.f32 %v390, %v396
    %v403 = vmul.f32 %v391, %v396
    %v404 = vmul.f32 %v392, %v396
    %v405 = vmul.f32 %v393, %v396
    %v406 = vsel %vm119, %v398, 0.0
    %407 = vadd.xlane.f32.xlu0 %v406
    %v408 = vpop.xlane.xlu0 %407
    %v409 = vsel %vm119, %v399, 0.0
    %410 = vadd.xlane.f32.xlu0 %v409
    %v411 = vpop.xlane.xlu0 %410
    %v412 = vsel %vm119, %v400, 0.0
    %413 = vadd.xlane.f32.xlu0 %v412
    %v414 = vpop.xlane.xlu0 %413
    %v415 = vsel %vm119, %v401, 0.0
    %416 = vadd.xlane.f32.xlu0 %v415
    %v417 = vpop.xlane.xlu0 %416
    %v418 = vsel %vm119, %v402, 0.0
    %419 = vadd.xlane.f32.xlu0 %v418
    %v420 = vpop.xlane.xlu0 %419
    %v421 = vsel %vm119, %v403, 0.0
    %422 = vadd.xlane.f32.xlu0 %v421
    %v423 = vpop.xlane.xlu0 %422
    %v424 = vsel %vm119, %v404, 0.0
    %425 = vadd.xlane.f32.xlu0 %v424
    %v426 = vpop.xlane.xlu0 %425
    %v427 = vsel %vm119, %v405, 0.0
    %428 = vadd.xlane.f32.xlu0 %v427
    %v429 = vpop.xlane.xlu0 %428
    %v430 = vld [vmem:[#allocation3] sm:$0x1]
    %v432 = vperm.slane %v430, 0
    %433 = vset.pattern.permute.xlu0 0
    %434 = vperm.xlu0 %433, %v432
    %v435 = vpop.permute.xlu0 %434
    %v437 = vadd.f32 %v408, %v435
    %v438 = vadd.f32 %v411, %v435
    %v439 = vadd.f32 %v414, %v435
    %v440 = vadd.f32 %v417, %v435
    %v441 = vadd.f32 %v420, %v435
    %v442 = vadd.f32 %v423, %v435
    %v443 = vadd.f32 %v426, %v435
    %v444 = vadd.f32 %v429, %v435
    %v453 = vlaneseq
    %v454 = vand.u32 %v453, 127
    %v455 = vperm.slane %v437, %v454
    %v456 = vperm.slane %v438, %v454
    %v457 = vperm.slane %v439, %v454
    %v458 = vperm.slane %v440, %v454
    %v459 = vperm.slane %v441, %v454
    %v460 = vperm.slane %v442, %v454
    %v461 = vperm.slane %v443, %v454
    %v462 = vperm.slane %v444, %v454
    %vm463 = vcmask 1041409
    %v464 = vsel %vm463, %v456, %v455
    %vm465 = vcmask 1042434
    %v466 = vsel %vm465, %v457, %v464
    %vm467 = vcmask 1043459
    %v468 = vsel %vm467, %v458, %v466
    %vm469 = vcmask 1044484
    %v470 = vsel %vm469, %v459, %v468
    %vm471 = vcmask 1045509
    %v472 = vsel %vm471, %v460, %v470
    %vm473 = vcmask 1046534
    %v474 = vsel %vm473, %v461, %v472
    %vm475 = vcmask 1047559
    %v476 = vsel %vm475, %v462, %v474
    %vm478 = vcmask 15360
    %479 = vst.msk [vmem:[%s7] sm:$0xff] %vm478, %v476
    // Predicated region
    $region34: #{tpu_custom_call.1} parent=1 // pred_check
      _
    $region35: #{tpu_custom_call.1} parent=1 // pred_check_branch
      %481 = sbr.rel (0) target = $region37
    $region36: #{tpu_custom_call.1} parent=1 // pred_region
      _
    $region37: #{tpu_custom_call.1} parent=1 // pred_fallthru
      _
    // Predicated region
    $region38: #{tpu_custom_call.1} parent=1 // pred_check
      _
    $region39: #{tpu_custom_call.1} parent=1 // pred_check_branch
      %483 = sbr.rel (0) target = $region41
    $region40: #{tpu_custom_call.1} parent=1 // pred_region
      %485 = vsyncadd [#allocation6], 0
      %s487 = sshll.u32 [#allocation7], 4
      %s488 = int_to_ptr.vmem [resolvable:$true] %s487
      %s489 = sshll.u32 %s8, 4
      %s490 = int_to_ptr.hbm [resolvable:$true] %s489
      %492 = dma.vmem_to_hbm [thread:$0]  %s488, 32, %s490, [#allocation6]
    $region41: #{tpu_custom_call.1} parent=1 // pred_fallthru
      _
    // Predicated region
    $region42: #{tpu_custom_call.1} parent=1 // pred_check
      _
    $region43: #{tpu_custom_call.1} parent=1 // pred_check_branch
      %494 = sbr.rel (0) target = $region45
    $region44: #{tpu_custom_call.1} parent=1 // pred_region
      _
    $region45: #{tpu_custom_call.1} parent=1 // pred_fallthru
      _
    // Predicated region
    $region46: #{tpu_custom_call.1} parent=1 // pred_check
      _
    $region47: #{tpu_custom_call.1} parent=1 // pred_check_branch
      %496 = sbr.rel (0) target = $region49
    $region48: #{tpu_custom_call.1} parent=1 // pred_region
      %498 = dma.done [#allocation6], 32
    $region49: #{tpu_custom_call.1} parent=1 // pred_fallthru
      _
    %499 = vsyncpa [#allocation5], 1
    %500 = vsyncpa [#allocation6], 1

</llo_original>
